<compile_context>
chip_gen: v7x
topology: tpu7x:2x2x1
jax: 0.10.0
libtpu: 0.0.40
codegen_flags: <defaults>
</compile_context>

<pallas_src>
import functools

import numpy as np
import jax
import jax.numpy as jnp
from jax.experimental import pallas as pl
from jax.experimental.pallas import tpu as pltpu


def _round_up(x, m):
    return ((x + m - 1) // m) * m


# ---------------------------------------------------------------------------
# Kernel A: fused Q/V/K/skip projection     res = x @ [Wq|Wv|Wk|Wskip] + b
# Outputs two bf16 slabs: src-side [Q|V] and dst-side [K|skip].
# ---------------------------------------------------------------------------
def _proj_kernel(x_ref, w_ref, b_ref, qv_ref, ks_ref):
    res = (
        jnp.dot(x_ref[...], w_ref[...], preferred_element_type=jnp.float32)
        + b_ref[...]
    )
    h2 = qv_ref.shape[-1]
    qv_ref[...] = res[:, :h2].astype(qv_ref.dtype)   # [Q | V]      (src side)
    ks_ref[...] = res[:, h2:].astype(ks_ref.dtype)   # [K | skip]   (dst side)


def _fused_projection(x, w_all, b_all, *, tile_rows):
    n, f = x.shape
    h4 = w_all.shape[1]
    h2 = h4 // 2
    grid = (n // tile_rows,)
    return pl.pallas_call(
        _proj_kernel,
        out_shape=(
            jax.ShapeDtypeStruct((n, h2), jnp.bfloat16),   # [Q | V]
            jax.ShapeDtypeStruct((n, h2), jnp.bfloat16),   # [K | skip]
        ),
        grid=grid,
        in_specs=[
            pl.BlockSpec((tile_rows, f), lambda i: (i, 0)),   # node-feature tile
            pl.BlockSpec((f, h4), lambda i: (0, 0)),          # fused weights
            pl.BlockSpec((1, h4), lambda i: (0, 0)),          # fused bias
        ],
        out_specs=(
            pl.BlockSpec((tile_rows, h2), lambda i: (i, 0)),
            pl.BlockSpec((tile_rows, h2), lambda i: (i, 0)),
        ),
        compiler_params=pltpu.CompilerParams(
            dimension_semantics=("parallel",)),
    )(x, w_all, b_all)


# ---------------------------------------------------------------------------
# Kernel B: masked multi-head attention + gated skip + LayerNorm + PReLU
# ---------------------------------------------------------------------------
def _attn_kernel(ks_dst_ref, qv_src_ref, adj_ref,
                 wga_ref, wgb_ref, gate_b_ref, ln_g_ref, ln_b_ref, alpha_ref,
                 o_ref, *, num_heads, out_feats, scale):
    h = num_heads * out_feats

    ks = ks_dst_ref[...]                 # (Td, 2H) bf16   [K | skip] of this dst tile
    qv = qv_src_ref[...]                 # (Ns, 2H) bf16   [Q | V] of all sources
    mask = adj_ref[...] > 0              # (Td, Ns) bool   adjacency mask rows

    k_all = ks[:, :h]                    # (Td, H) bf16
    skip = ks[:, h:].astype(jnp.float32)  # (Td, H) f32
    q_all = qv[:, :h]                    # (Ns, H) bf16
    v_all = qv[:, h:]                    # (Ns, H) bf16

    neg_inf = jnp.float32(-1e30)
    head_outs = []
    for head in range(num_heads):
        lo = head * out_feats
        hi = lo + out_feats
        k_h = k_all[:, lo:hi]            # (Td, d) bf16
        q_h = q_all[:, lo:hi]            # (Ns, d) bf16
        v_h = v_all[:, lo:hi]            # (Ns, d) bf16

        # scores[t, s] = <q[s], k[t]> * 1/sqrt(d)   (bf16 MXU operands, f32 acc)
        s = jax.lax.dot_general(
            k_h, q_h, (((1,), (1,)), ((), ())),
            preferred_element_type=jnp.float32) * scale
        s = jnp.where(mask, s, neg_inf)

        # numerically stable softmax over source nodes (edge_softmax), f32 stats
        m = jnp.max(s, axis=-1, keepdims=True)
        p = jnp.exp(s - m)
        l = jnp.sum(p, axis=-1, keepdims=True)
        sa = (p * pl.reciprocal(l, approx=True)).astype(jnp.bfloat16)

        head_outs.append(
            jnp.dot(sa, v_h, preferred_element_type=jnp.float32))  # (Td, d) f32

    rst = jnp.concatenate(head_outs, axis=-1)      # (Td, H) f32

    # gated skip connection, algebraically folded:
    #   g = sigmoid( skip·(wg0+wg2) + rst·(wg1-wg2) + bg )
    g_logit = (
        jnp.sum(skip * wga_ref[...] + rst * wgb_ref[...], axis=-1, keepdims=True)
        + gate_b_ref[...]
    )                                              # (Td, 1)
    gate = pl.reciprocal(1.0 + jnp.exp(-g_logit), approx=True)
    rst = gate * skip + (1.0 - gate) * rst

    # LayerNorm over the feature dimension (eps = 1e-5, affine)
    mean = jnp.mean(rst, axis=-1, keepdims=True)
    ctr = rst - mean
    var = jnp.mean(ctr * ctr, axis=-1, keepdims=True)
    rst = ctr * jax.lax.rsqrt(var + 1e-5) * ln_g_ref[...] + ln_b_ref[...]

    # PReLU (single shared alpha, PyTorch default init 0.25)
    alpha = alpha_ref[...]                         # (1, 1)
    o_ref[...] = jnp.where(rst >= 0.0, rst, alpha * rst)


# ---------------------------------------------------------------------------
# Python wrapper
# ---------------------------------------------------------------------------
def transformer_conv(feat, adj, params, *, num_heads, out_feats, tile_rows=None):
    """feat: (N, F) node features; adj: (N_dst, N_src) {0,1} mask, adj[t,s]=1 iff edge s->t."""
    feat = jnp.asarray(feat, jnp.float32)
    adj = jnp.asarray(adj, jnp.float32)
    n, f = feat.shape
    h = num_heads * out_feats

    # Large row tiles keep the MXU busy and amortize per-grid-step overhead.
    # (Small graphs collapse to a single full-size tile.)
    if tile_rows is None:
        if n >= 1024:
            tile_rows = 256
        elif n >= 128:
            tile_rows = 128
        else:
            tile_rows = _round_up(max(n, 8), 16)   # bf16 blocks want multiples of 16

    n_pad = _round_up(n, tile_rows)
    if n_pad != n:
        feat = jnp.pad(feat, ((0, n_pad - n), (0, 0)))
        adj = jnp.pad(adj, ((0, n_pad - n), (0, n_pad - n)))  # padded srcs masked out

    # The projection kernel can use a bigger row tile independently of Kernel B.
    if n_pad <= 512:
        tile_a = n_pad
    else:
        tile_a = tile_rows
        for cand in (512, 256, 128):
            if n_pad % cand == 0:
                tile_a = cand
                break

    # Fused projection weights, column order [Wq | Wv | Wk | Wskip] so the two
    # output slabs are src-side [Q|V] and dst-side [K|skip].
    w_all = jnp.concatenate(
        [params["wq"], params["wv"], params["wk"], params["wskip"]], axis=1)
    b_all = jnp.concatenate(
        [params["bq"], params["bv"], params["bk"], params["bskip"]], axis=0
    ).reshape(1, 4 * h)

    proj_qv, proj_ks = _fused_projection(feat, w_all, b_all, tile_rows=tile_a)

    # Adjacency is only used as a >0 mask: stream it as bf16 (exact for 0/1),
    # halving the dominant O(N^2) DMA and the resident (tile_rows, n_pad) block.
    adj_b = adj.astype(jnp.bfloat16)

    # Gate folding: [skip | rst | skip-rst] @ wg == skip·(wg0+wg2) + rst·(wg1-wg2)
    wg3 = params["wg"].reshape(3, h)
    wga = (wg3[0] + wg3[2]).reshape(1, h).astype(jnp.float32)
    wgb = (wg3[1] - wg3[2]).reshape(1, h).astype(jnp.float32)
    gate_b = params["bg"].reshape(1, 1)
    ln_g = params["ln_gamma"].reshape(1, h)
    ln_b = params["ln_beta"].reshape(1, h)
    alpha = params["prelu_alpha"].reshape(1, 1)

    scale = 1.0 / float(np.sqrt(out_feats))   # precomputed reciprocal (no in-kernel divide)
    kernel = functools.partial(
        _attn_kernel, num_heads=num_heads, out_feats=out_feats, scale=scale)

    grid = (n_pad // tile_rows,)
    out = pl.pallas_call(
        kernel,
        out_shape=jax.ShapeDtypeStruct((n_pad, h), jnp.float32),
        grid=grid,
        in_specs=[
            pl.BlockSpec((tile_rows, 2 * h), lambda i: (i, 0)),  # dst tile [K|skip]
            pl.BlockSpec((n_pad, 2 * h), lambda i: (0, 0)),      # all sources [Q|V]
            pl.BlockSpec((tile_rows, n_pad), lambda i: (i, 0)),  # adjacency rows
            pl.BlockSpec((1, h), lambda i: (0, 0)),              # gate w (skip term)
            pl.BlockSpec((1, h), lambda i: (0, 0)),              # gate w (rst term)
            pl.BlockSpec((1, 1), lambda i: (0, 0)),              # gate bias
            pl.BlockSpec((1, h), lambda i: (0, 0)),              # LN gamma
            pl.BlockSpec((1, h), lambda i: (0, 0)),              # LN beta
            pl.BlockSpec((1, 1), lambda i: (0, 0)),              # PReLU alpha
        ],
        out_specs=pl.BlockSpec((tile_rows, h), lambda i: (i, 0)),
        compiler_params=pltpu.CompilerParams(
            dimension_semantics=("parallel",),
            vmem_limit_bytes=64 * 1024 * 1024),
    )(proj_ks, proj_qv, adj_b, wga, wgb, gate_b, ln_g, ln_b, alpha)

    # Padded dst rows hold garbage (all-zero adjacency -> uniform softmax); slice off.
    return out[:n]


# ---------------------------------------------------------------------------
# Pure-JAX reference (mirrors the PyTorch forward) and parameter init
# ---------------------------------------------------------------------------
def transformer_conv_reference(feat, adj, params, *, num_heads, out_feats):
    hp = jax.lax.Precision.HIGHEST
    n = feat.shape[0]
    h = num_heads * out_feats
    q = jnp.dot(feat, params["wq"], precision=hp) + params["bq"]
    k = jnp.dot(feat, params["wk"], precision=hp) + params["bk"]
    v = jnp.dot(feat, params["wv"], precision=hp) + params["bv"]
    q3 = q.reshape(n, num_heads, out_feats)
    k3 = k.reshape(n, num_heads, out_feats)
    v3 = v.reshape(n, num_heads, out_feats)
    scores = jnp.einsum("shd,thd->tsh", q3, k3, precision=hp) / np.sqrt(out_feats)
    scores = jnp.where(adj[:, :, None] > 0, scores, -1e30)
    sa = jax.nn.softmax(scores, axis=1)
    agg = jnp.einsum("tsh,shd->thd", sa, v3, precision=hp).reshape(n, h)
    skip = jnp.dot(feat, params["wskip"], precision=hp) + params["bskip"]
    z = jnp.concatenate([skip, agg, skip - agg], axis=-1)
    gate = jax.nn.sigmoid(jnp.dot(z, params["wg"], precision=hp) + params["bg"])
    rst = gate * skip + (1.0 - gate) * agg
    mean = rst.mean(-1, keepdims=True)
    var = ((rst - mean) ** 2).mean(-1, keepdims=True)
    rst = (rst - mean) / jnp.sqrt(var + 1e-5) * params["ln_gamma"] + params["ln_beta"]
    return jnp.where(rst >= 0, rst, params["prelu_alpha"] * rst)


def init_params(key, in_feats, out_feats, num_heads):
    h = out_feats * num_heads
    ks = jax.random.split(key, 10)

    def lin(kw, kb, fan_in, fan_out):
        w = jax.random.normal(kw, (fan_in, fan_out), jnp.float32) / np.sqrt(fan_in)
        b = 0.1 * jax.random.normal(kb, (fan_out,), jnp.float32)
        return w, b

    wq, bq = lin(ks[0], ks[1], in_feats, h)
    wk, bk = lin(ks[2], ks[3], in_feats, h)
    wv, bv = lin(ks[4], ks[5], in_feats, h)
    wskip, bskip = lin(ks[6], ks[7], in_feats, h)
    wg, bg = lin(ks[8], ks[9], 3 * h, 1)
    return dict(
        wq=wq, bq=bq, wk=wk, bk=bk, wv=wv, bv=bv, wskip=wskip, bskip=bskip,
        wg=wg, bg=bg,
        ln_gamma=jnp.ones((h,), jnp.float32),
        ln_beta=jnp.zeros((h,), jnp.float32),
        prelu_alpha=jnp.asarray(0.25, jnp.float32),
    )


if __name__ == "__main__":
    # Small shapes: 16 nodes, in_feats=16, out_feats=32, num_heads=4 -> hidden = 128 (lane dense)
    in_feats, out_feats, num_heads = 16, 32, 4
    n_nodes = 16

    key = jax.random.PRNGKey(0)
    k_feat, k_adj, k_par = jax.random.split(key, 3)

    feat = jax.random.normal(k_feat, (n_nodes, in_feats), jnp.float32)
    adj = (jax.random.uniform(k_adj, (n_nodes, n_nodes)) < 0.35).astype(jnp.float32)
    adj = jnp.maximum(adj, jnp.eye(n_nodes, dtype=jnp.float32))  # self-loops -> no 0-in-degree

    # Mirror the module's allow_zero_in_degree=False check (DGLError in torch).
    assert bool((np.asarray(adj).sum(axis=1) > 0).all()), "0-in-degree node in graph"

    params = init_params(k_par, in_feats, out_feats, num_heads)

    # TODO(synk): get_attention=True path (returning per-edge softmax weights) is not exposed;
    # only the node output `rst` is returned, and the sparse DGL graph is a dense adjacency mask.
    out = transformer_conv(feat, adj, params, num_heads=num_heads, out_feats=out_feats)
    out = jax.block_until_ready(out)

    ref = transformer_conv_reference(feat, adj, params,
                                     num_heads=num_heads, out_feats=out_feats)
    ref = jax.block_until_ready(ref)

    assert out.shape == (n_nodes, out_feats * num_heads)
    np.testing.assert_allclose(np.asarray(out), np.asarray(ref), rtol=5e-2, atol=5e-2)
    print("KERNEL_OK")
</pallas_src>

<mosaic_0001>
module attributes {stable_mosaic.version = 11 : i64} {
  func.func @_proj_kernel(%arg0: i32, %arg1: memref<16x16xf32, #tpu.memory_space<vmem>>, %arg2: memref<16x512xf32, #tpu.memory_space<vmem>>, %arg3: memref<1x512xf32, #tpu.memory_space<vmem>>, %arg4: memref<16x256xbf16, #tpu.memory_space<vmem>>, %arg5: memref<16x256xbf16, #tpu.memory_space<vmem>>) attributes {dimension_semantics = [#tpu.dimension_semantics<parallel>], iteration_bounds = array<i64: 1>, scalar_prefetch = 0 : i64, scratch_operands = 0 : i64, tpu.core_type = #tpu.core_type<tc>, window_params = [{transform_indices = @transform_0, window_bounds = array<i64: 16, 16>}, {pipeline_mode = #tpu.pipeline_mode<synchronous>, transform_indices = @transform_1, window_bounds = array<i64: 16, 512>}, {pipeline_mode = #tpu.pipeline_mode<synchronous>, transform_indices = @transform_2, window_bounds = array<i64: 1, 512>}, {transform_indices = @transform_3, window_bounds = array<i64: 16, 256>}, {transform_indices = @transform_4, window_bounds = array<i64: 16, 256>}]} {
    %c0 = arith.constant 0 : index
    %c0_0 = arith.constant 0 : index
    %0 = vector.load %arg1[%c0, %c0_0] : memref<16x16xf32, #tpu.memory_space<vmem>>, vector<16x16xf32>
    %c0_1 = arith.constant 0 : index
    %c0_2 = arith.constant 0 : index
    %1 = vector.load %arg2[%c0_1, %c0_2] : memref<16x512xf32, #tpu.memory_space<vmem>>, vector<16x512xf32>
    %cst = arith.constant dense<0.000000e+00> : vector<16x512xf32>
    %2 = tpu.matmul %0, %1, %cst {dimension_numbers = #tpu.dot_dimension_numbers<[1], [0], [0], [1], [0, 0, 1, 1], [], []>} : vector<16x16xf32>, vector<16x512xf32>, vector<16x512xf32> -> vector<16x512xf32>
    %c0_3 = arith.constant 0 : index
    %c0_4 = arith.constant 0 : index
    %3 = vector.load %arg3[%c0_3, %c0_4] : memref<1x512xf32, #tpu.memory_space<vmem>>, vector<1x512xf32>
    %4 = vector.broadcast %3 : vector<1x512xf32> to vector<16x512xf32>
    %5 = arith.addf %2, %4 : vector<16x512xf32>
    %6 = vector.extract_strided_slice %5 {offsets = [0, 0], sizes = [16, 256], strides = [1, 1]} : vector<16x512xf32> to vector<16x256xf32>
    %7 = arith.truncf %6 : vector<16x256xf32> to vector<16x256xbf16>
    %c0_5 = arith.constant 0 : index
    %c0_6 = arith.constant 0 : index
    %8 = vector.load %arg4[%c0_5, %c0_6] : memref<16x256xbf16, #tpu.memory_space<vmem>>, vector<16x256xbf16>
    tpu.vector_store %arg4[%c0_5, %c0_6], %7 {strides = array<i32>} : memref<16x256xbf16, #tpu.memory_space<vmem>>, vector<16x256xbf16>,
    %9 = vector.extract_strided_slice %5 {offsets = [0, 256], sizes = [16, 256], strides = [1, 1]} : vector<16x512xf32> to vector<16x256xf32>
    %10 = arith.truncf %9 : vector<16x256xf32> to vector<16x256xbf16>
    %c0_7 = arith.constant 0 : index
    %c0_8 = arith.constant 0 : index
    %11 = vector.load %arg5[%c0_7, %c0_8] : memref<16x256xbf16, #tpu.memory_space<vmem>>, vector<16x256xbf16>
    tpu.vector_store %arg5[%c0_7, %c0_8], %10 {strides = array<i32>} : memref<16x256xbf16, #tpu.memory_space<vmem>>, vector<16x256xbf16>,
    return
  }
  func.func @transform_0(%arg0: i32) -> (i32, i32) {
    %c0_i32 = arith.constant 0 : i32
    %c0_i32_0 = arith.constant 0 : i32
    return %arg0, %c0_i32 : i32, i32
  }
  func.func @transform_1(%arg0: i32) -> (i32, i32) {
    %c0_i32 = arith.constant 0 : i32
    %c0_i32_0 = arith.constant 0 : i32
    %c0_i32_1 = arith.constant 0 : i32
    return %c0_i32, %c0_i32_0 : i32, i32
  }
  func.func @transform_2(%arg0: i32) -> (i32, i32) {
    %c0_i32 = arith.constant 0 : i32
    %c0_i32_0 = arith.constant 0 : i32
    %c0_i32_1 = arith.constant 0 : i32
    return %c0_i32, %c0_i32_0 : i32, i32
  }
  func.func @transform_3(%arg0: i32) -> (i32, i32) {
    %c0_i32 = arith.constant 0 : i32
    %c0_i32_0 = arith.constant 0 : i32
    return %arg0, %c0_i32 : i32, i32
  }
  func.func @transform_4(%arg0: i32) -> (i32, i32) {
    %c0_i32 = arith.constant 0 : i32
    %c0_i32_0 = arith.constant 0 : i32
    return %arg0, %c0_i32 : i32, i32
  }
}

</mosaic_0001>

<llo_original>
// kernel: tpu_custom_call.1
$region0: #{tpu_custom_call.1}
  #allocation0 [shape = 'u32[]', space=smem, size = 0x4, offset = 0x4, fixed_abs, tag = 'smem constant byte address 0x4 - core index']
  #allocation1 [shape = 'u32[144,128]{1,0:T(1,128)}', space=vmem, size = 0x12000, scoped, tag = 'internal scratch']
  %s0 = inlined_call_operand.hbm [shape: f32[16,16], index: 0, kind: input, shape index: {}]
  %s1 = inlined_call_operand.hbm [shape: f32[16,512], index: 1, kind: input, shape index: {}]
  %s2 = inlined_call_operand.vmem [shape: f32[1,512], index: 2, kind: input, shape index: {}]
  %s3 = inlined_call_operand.hbm [shape: bf16[16,256], index: 3, kind: output, shape index: {0}]
  %s4 = inlined_call_operand.hbm [shape: bf16[16,256], index: 4, kind: output, shape index: {1}]
  %5 = xla_tuple %s3, %s4
  %s6 = sld [smem:[#allocation0]]
  $region38: #{tpu_custom_call.1} parent=0
    _
  %s8 = ssub.s32 1, %s6
  %s9 = scalar_select 0, %s8, %s6
  $region1: #{tpu_custom_call.1} parent=0
    #allocation2 [shape = 'u8[8192]{0}', space=vmem, size = 0x2000, scoped, tag = 'input window, operand 0, single buffered']
    #allocation3 [shape = 's32[1]{0}', space=sflag, size = 0x4, scoped, tag = 'scoped memory for tpu_custom_call.1']
    #allocation4 [shape = 's32[1]{0}', space=sflag, size = 0x4, scoped, tag = 'scoped memory for tpu_custom_call.1']
    #allocation5 [shape = 'u8[32768]{0}', space=vmem, size = 0x8000, scoped, tag = 'input window, operand 1, single buffered']
    #allocation6 [shape = 's32[1]{0}', space=sflag, size = 0x4, scoped, tag = 'scoped memory for tpu_custom_call.1']
    #allocation7 [shape = 'u8[8192]{0}', space=vmem, size = 0x2000, scoped, tag = 'output window, operand 0, single buffered']
    #allocation8 [shape = 'u8[8192]{0}', space=vmem, size = 0x2000, scoped, tag = 'output window, operand 1, single buffered']
    #allocation9 [shape = 's32[1]{0}', space=sflag, size = 0x4, scoped, tag = 'scoped memory for tpu_custom_call.1']
    %10 = vsyncpa [#allocation3], 0
    %11 = vsyncpa [#allocation6], 0
    %12 = vsyncpa [#allocation4], 0
    %13 = vsyncpa [#allocation9], 0
    // Predicated region
    $region2: #{tpu_custom_call.1} parent=1 // pred_check
      _
    $region3: #{tpu_custom_call.1} parent=1 // pred_check_branch
      %15 = sbr.rel (0) target = $region5
    $region4: #{tpu_custom_call.1} parent=1 // pred_region
      %s17 = ssub.s32 256, 256
      %18 = vsyncadd [#allocation3], %s17
      %s19 = sshll.u32 [#allocation2], 4
      %s20 = int_to_ptr.vmem [resolvable:$true] %s19
      %25 = dma.hbm_to_vmem [thread:$0]  %s0, 256, %s20, [#allocation3], 128, 128, 8
    $region5: #{tpu_custom_call.1} parent=1 // pred_fallthru
      _
    // Predicated region
    $region6: #{tpu_custom_call.1} parent=1 // pred_check
      _
    $region7: #{tpu_custom_call.1} parent=1 // pred_check_branch
      %27 = sbr.rel (0) target = $region9
    $region8: #{tpu_custom_call.1} parent=1 // pred_region
      %s29 = ssub.s32 1024, 1024
      %30 = vsyncadd [#allocation6], %s29
      %s31 = sshll.u32 [#allocation5], 4
      %s32 = int_to_ptr.vmem [resolvable:$true] %s31
      %37 = dma.hbm_to_vmem [thread:$0]  %s1, 1024, %s32, [#allocation6], 512, 512, 32
    $region9: #{tpu_custom_call.1} parent=1 // pred_fallthru
      _
    // Predicated region
    $region10: #{tpu_custom_call.1} parent=1 // pred_check
      _
    $region11: #{tpu_custom_call.1} parent=1 // pred_check_branch
      %39 = sbr.rel (0) target = $region13
    $region12: #{tpu_custom_call.1} parent=1 // pred_region
      _
    $region13: #{tpu_custom_call.1} parent=1 // pred_fallthru
      _
    // Predicated region
    $region14: #{tpu_custom_call.1} parent=1 // pred_check
      _
    $region15: #{tpu_custom_call.1} parent=1 // pred_check_branch
      %41 = sbr.rel (0) target = $region17
    $region16: #{tpu_custom_call.1} parent=1 // pred_region
      %42 = dma.done [#allocation3], 256
    $region17: #{tpu_custom_call.1} parent=1 // pred_fallthru
      _
    // Predicated region
    $region18: #{tpu_custom_call.1} parent=1 // pred_check
      _
    $region19: #{tpu_custom_call.1} parent=1 // pred_check_branch
      %44 = sbr.rel (0) target = $region21
    $region20: #{tpu_custom_call.1} parent=1 // pred_region
      %45 = dma.done [#allocation6], 1024
    $region21: #{tpu_custom_call.1} parent=1 // pred_fallthru
      _
    %v46 = vld [vmem:[#allocation2] sm:$0xff]
    %v47 = vld [vmem:[#allocation2 + $0x8] sm:$0xff]
    %v48 = vld [vmem:[#allocation5] sm:$0xff]
    %v49 = vld [vmem:[#allocation5 + $0x8] sm:$0xff]
    %v50 = vld [vmem:[#allocation5 + $0x10] sm:$0xff]
    %v51 = vld [vmem:[#allocation5 + $0x18] sm:$0xff]
    %v52 = vld [vmem:[#allocation5 + $0x20] sm:$0xff]
    %v53 = vld [vmem:[#allocation5 + $0x28] sm:$0xff]
    %v54 = vld [vmem:[#allocation5 + $0x30] sm:$0xff]
    %v55 = vld [vmem:[#allocation5 + $0x38] sm:$0xff]
    %v56 = vld [vmem:[%s2] sm:$0xf]
    %v58 = vlaneseq
    %v59 = vshrl.u32 %v58, 7
    %v60 = vsub.s32 0, %v59
    %v61 = vrot.slane %v56, %v60
    %v62 = vlaneseq
    %v63 = vshrl.u32 %v62, 7
    %v64 = vsub.s32 1, %v63
    %v65 = vrot.slane %v56, %v64
    %v66 = vlaneseq
    %v67 = vshrl.u32 %v66, 7
    %v68 = vsub.s32 2, %v67
    %v69 = vrot.slane %v56, %v68
    %v70 = vlaneseq
    %v71 = vshrl.u32 %v70, 7
    %v72 = vsub.s32 3, %v71
    %v73 = vrot.slane %v56, %v72
    %vm78 = vcmask 130048
    %v80 = vsel %vm78, %v46, 0
    %v83 = vsel %vm78, %v47, 0
    %85 = vmatprep.subr.mxu0 %v49
    %86 = vmatpush1.msra.mxu0 %v48
    %87 = vmatprep.subr.mxu0 %v53
    %88 = vmatpush1.msra.mxu0 %v52
    %89 = vmatprep.subr.mxu0 0.0
    %90 = vmatpush1.msra.mxu0 0.0
    %91 = vmatprep.subr.mxu0 0.0
    %92 = vmatpush1.msra.mxu0 0.0
    %93 = vmatprep.subr.mxu0 0.0
    %94 = vmatpush1.msra.mxu0 0.0
    %95 = vmatprep.subr.mxu0 0.0
    %96 = vmatpush1.msra.mxu0 0.0
    %97 = vmatprep.subr.mxu0 0.0
    %98 = vmatpush1.msra.mxu0 0.0
    %99 = vmatprep.subr.mxu0 0.0
    %100 = vmatpush1.msra.mxu0 0.0
    %101 = vmatprep.subr.mxu0 0.0
    %102 = vmatpush1.msra.mxu0 0.0
    %103 = vmatprep.subr.mxu0 0.0
    %104 = vmatpush1.msra.mxu0 0.0
    %105 = vmatprep.subr.mxu0 0.0
    %106 = vmatpush1.msra.mxu0 0.0
    %107 = vmatprep.subr.mxu0 0.0
    %108 = vmatpush1.msra.mxu0 0.0
    %109 = vmatprep.subr.mxu0 0.0
    %110 = vmatpush1.msra.mxu0 0.0
    %111 = vmatprep.subr.mxu0 0.0
    %112 = vmatpush1.msra.mxu0 0.0
    %113 = vmatprep.subr.mxu0 0.0
    %114 = vmatpush1.msra.mxu0 0.0
    %115 = vmatprep.subr.mxu0 0.0
    %116 = vmatpush1.msra.mxu0 0.0
    %117 = vmatprep.subr.mxu0 0.0
    %118 = vmatpush1.msra.mxu0 0.0
    %119 = vmatprep.subr.mxu0 0.0
    %120 = vmatpush1.msra.mxu0 0.0
    %121 = vmatprep.subr.mxu0 0.0
    %122 = vmatpush1.msra.mxu0 0.0
    %123 = vmatprep.subr.mxu0 0.0
    %124 = vmatpush1.msra.mxu0 0.0
    %125 = vmatprep.subr.mxu0 0.0
    %126 = vmatpush1.msra.mxu0 0.0
    %127 = vmatprep.subr.mxu0 0.0
    %128 = vmatpush1.msra.mxu0 0.0
    %129 = vmatprep.subr.mxu0 0.0
    %130 = vmatpush1.msra.mxu0 0.0
    %131 = vmatprep.subr.mxu0 0.0
    %132 = vmatpush1.msra.mxu0 0.0
    %133 = vmatprep.subr.mxu0 0.0
    %134 = vmatpush1.msra.mxu0 0.0
    %135 = vmatprep.subr.mxu0 0.0
    %136 = vmatpush1.msra.mxu0 0.0
    %137 = vmatprep.subr.mxu0 0.0
    %138 = vmatpush1.msra.mxu0 0.0
    %139 = vmatprep.subr.mxu0 0.0
    %140 = vmatpush1.msra.mxu0 0.0
    %141 = vmatprep.subr.mxu0 0.0
    %142 = vmatpush1.msra.mxu0 0.0
    %143 = vmatprep.subr.mxu0 0.0
    %144 = vmatpush1.msra.mxu0 0.0
    %145 = vmatprep.subr.mxu0 0.0
    %146 = vmatpush1.msra.mxu0 0.0
    %147 = vmatprep.subr.mxu0 0.0
    %148 = vmatpush1.msra.mxu0 0.0
    %149 = vmatprep.mubr.f32.mxu0 0.0
    %150 = vmatmul.mubr.f32.gmra.mrb[0].mxu0 %v80
    %v151 = vpop.f32.mrb[0].mxu0
    %v152 = vadd.f32 %v61, %v151
    %v153 = vpop.f32.mrb[0].mxu0
    %v154 = vadd.f32 %v65, %v153
    %155 = vmatprep.mubr.f32.mxu0 0.0
    %156 = vmatmul.mubr.f32.gmra.mrb[0].mxu0 %v83
    %v157 = vpop.f32.mrb[0].mxu0
    %v158 = vadd.f32 %v61, %v157
    %v159 = vpop.f32.mrb[0].mxu0
    %v160 = vadd.f32 %v65, %v159
    %161 = vdwg.mxu0
    %162 = vmatprep.subr.mxu0 %v51
    %163 = vmatpush1.msra.mxu0 %v50
    %164 = vmatprep.subr.mxu0 %v55
    %165 = vmatpush1.msra.mxu0 %v54
    %166 = vmatprep.subr.mxu0 0.0
    %167 = vmatpush1.msra.mxu0 0.0
    %168 = vmatprep.subr.mxu0 0.0
    %169 = vmatpush1.msra.mxu0 0.0
    %170 = vmatprep.subr.mxu0 0.0
    %171 = vmatpush1.msra.mxu0 0.0
    %172 = vmatprep.subr.mxu0 0.0
    %173 = vmatpush1.msra.mxu0 0.0
    %174 = vmatprep.subr.mxu0 0.0
    %175 = vmatpush1.msra.mxu0 0.0
    %176 = vmatprep.subr.mxu0 0.0
    %177 = vmatpush1.msra.mxu0 0.0
    %178 = vmatprep.subr.mxu0 0.0
    %179 = vmatpush1.msra.mxu0 0.0
    %180 = vmatprep.subr.mxu0 0.0
    %181 = vmatpush1.msra.mxu0 0.0
    %182 = vmatprep.subr.mxu0 0.0
    %183 = vmatpush1.msra.mxu0 0.0
    %184 = vmatprep.subr.mxu0 0.0
    %185 = vmatpush1.msra.mxu0 0.0
    %186 = vmatprep.subr.mxu0 0.0
    %187 = vmatpush1.msra.mxu0 0.0
    %188 = vmatprep.subr.mxu0 0.0
    %189 = vmatpush1.msra.mxu0 0.0
    %190 = vmatprep.subr.mxu0 0.0
    %191 = vmatpush1.msra.mxu0 0.0
    %192 = vmatprep.subr.mxu0 0.0
    %193 = vmatpush1.msra.mxu0 0.0
    %194 = vmatprep.subr.mxu0 0.0
    %195 = vmatpush1.msra.mxu0 0.0
    %196 = vmatprep.subr.mxu0 0.0
    %197 = vmatpush1.msra.mxu0 0.0
    %198 = vmatprep.subr.mxu0 0.0
    %199 = vmatpush1.msra.mxu0 0.0
    %200 = vmatprep.subr.mxu0 0.0
    %201 = vmatpush1.msra.mxu0 0.0
    %202 = vmatprep.subr.mxu0 0.0
    %203 = vmatpush1.msra.mxu0 0.0
    %204 = vmatprep.subr.mxu0 0.0
    %205 = vmatpush1.msra.mxu0 0.0
    %206 = vmatprep.subr.mxu0 0.0
    %207 = vmatpush1.msra.mxu0 0.0
    %208 = vmatprep.subr.mxu0 0.0
    %209 = vmatpush1.msra.mxu0 0.0
    %210 = vmatprep.subr.mxu0 0.0
    %211 = vmatpush1.msra.mxu0 0.0
    %212 = vmatprep.subr.mxu0 0.0
    %213 = vmatpush1.msra.mxu0 0.0
    %214 = vmatprep.subr.mxu0 0.0
    %215 = vmatpush1.msra.mxu0 0.0
    %216 = vmatprep.subr.mxu0 0.0
    %217 = vmatpush1.msra.mxu0 0.0
    %218 = vmatprep.subr.mxu0 0.0
    %219 = vmatpush1.msra.mxu0 0.0
    %220 = vmatprep.subr.mxu0 0.0
    %221 = vmatpush1.msra.mxu0 0.0
    %222 = vmatprep.subr.mxu0 0.0
    %223 = vmatpush1.msra.mxu0 0.0
    %224 = vmatprep.subr.mxu0 0.0
    %225 = vmatpush1.msra.mxu0 0.0
    %226 = vmatprep.mubr.f32.mxu0 0.0
    %227 = vmatmul.mubr.f32.gmra.mrb[0].mxu0 %v80
    %v228 = vpop.f32.mrb[0].mxu0
    %v229 = vadd.f32 %v69, %v228
    %v230 = vpop.f32.mrb[0].mxu0
    %v231 = vadd.f32 %v73, %v230
    %232 = vmatprep.mubr.f32.mxu0 0.0
    %233 = vmatmul.mubr.f32.gmra.mrb[0].mxu0 %v83
    %v234 = vpop.f32.mrb[0].mxu0
    %v235 = vadd.f32 %v69, %v234
    %v236 = vpop.f32.mrb[0].mxu0
    %v237 = vadd.f32 %v73, %v236
    %238 = vdwg.mxu0
    %v239 = vpack.c.bf16 %v158, %v152
    %v240 = vpack.c.bf16 %v160, %v154
    %v243 = vunpack.c.l.b16 %v239
    %v244 = vunpack.c.l.b16 %v240
    %v245 = vunpack.c.h.b16 %v239
    %v246 = vunpack.c.h.b16 %v240
    %v247 = vpack.c.b16 %v244, %v243
    %v248 = vpack.c.b16 %v246, %v245
    %251 = vst [vmem:[#allocation7] sm:$0xff] %v247
    %252 = vst [vmem:[#allocation7 + $0x8] sm:$0xff] %v248
    %v253 = vpack.c.bf16 %v235, %v229
    %v254 = vpack.c.bf16 %v237, %v231
    %v257 = vunpack.c.l.b16 %v253
    %v258 = vunpack.c.l.b16 %v254
    %v259 = vunpack.c.h.b16 %v253
    %v260 = vunpack.c.h.b16 %v254
    %v261 = vpack.c.b16 %v258, %v257
    %v262 = vpack.c.b16 %v260, %v259
    %265 = vst [vmem:[#allocation8] sm:$0xff] %v261
    %266 = vst [vmem:[#allocation8 + $0x8] sm:$0xff] %v262
    // Predicated region
    $region22: #{tpu_custom_call.1} parent=1 // pred_check
      _
    $region23: #{tpu_custom_call.1} parent=1 // pred_check_branch
      %268 = sbr.rel (0) target = $region25
    $region24: #{tpu_custom_call.1} parent=1 // pred_region
      %s270 = ssub.s32 256, 256
      %271 = vsyncadd [#allocation4], %s270
      %s272 = sshll.u32 [#allocation7], 4
      %s273 = int_to_ptr.vmem [resolvable:$true] %s272
      %278 = dma.vmem_to_hbm [thread:$0]  %s273, 256, %s3, [#allocation4], 128, 128, 8
    $region25: #{tpu_custom_call.1} parent=1 // pred_fallthru
      _
    // Predicated region
    $region26: #{tpu_custom_call.1} parent=1 // pred_check
      _
    $region27: #{tpu_custom_call.1} parent=1 // pred_check_branch
      %280 = sbr.rel (0) target = $region29
    $region28: #{tpu_custom_call.1} parent=1 // pred_region
      %s282 = ssub.s32 256, 256
      %283 = vsyncadd [#allocation9], %s282
      %s284 = sshll.u32 [#allocation8], 4
      %s285 = int_to_ptr.vmem [resolvable:$true] %s284
      %290 = dma.vmem_to_hbm [thread:$0]  %s285, 256, %s4, [#allocation9], 128, 128, 8
    $region29: #{tpu_custom_call.1} parent=1 // pred_fallthru
      _
    // Predicated region
    $region30: #{tpu_custom_call.1} parent=1 // pred_check
      _
    $region31: #{tpu_custom_call.1} parent=1 // pred_check_branch
      %292 = sbr.rel (0) target = $region33
    $region32: #{tpu_custom_call.1} parent=1 // pred_region
      %293 = dma.done [#allocation4], 256
    $region33: #{tpu_custom_call.1} parent=1 // pred_fallthru
      _
    // Predicated region
    $region34: #{tpu_custom_call.1} parent=1 // pred_check
      _
    $region35: #{tpu_custom_call.1} parent=1 // pred_check_branch
      %295 = sbr.rel (0) target = $region37
    $region36: #{tpu_custom_call.1} parent=1 // pred_region
      %296 = dma.done [#allocation9], 256
    $region37: #{tpu_custom_call.1} parent=1 // pred_fallthru
      _
    %297 = vsyncpa [#allocation3], 1
    %298 = vsyncpa [#allocation6], 1
    %299 = vsyncpa [#allocation4], 1
    %300 = vsyncpa [#allocation9], 1

</llo_original>
